<compile_context>
chip_gen: v5e
topology: v5e:2x2
jax: 0.10.0
libtpu: 0.0.40
codegen_flags: <defaults>
</compile_context>

<pallas_src>
import functools

import jax
import jax.numpy as jnp
from jax.experimental import pallas as pl
from jax.experimental.pallas import tpu as pltpu

PART = 6
BN_EPS = 1e-5
LANE = 128


def _pcb_head_kernel(feat_ref, w_ref, b_ref, out_ref):
    """One grid step = (one body part, one class tile).

    feat_ref: (1, B, C)   pooled features of this part (bf16)
    w_ref:    (1, C, TN)  BN-folded classifier weight tile (bf16)
    b_ref:    (1, 1, TN)  BN-folded bias tile (f32)
    out_ref:  (1, B, TN)  logits tile (f32)
    """
    feat = feat_ref[0]                              # (B, C)
    w = w_ref[0]                                    # (C, TN)
    out_ref[0] = (
        jnp.dot(feat, w, preferred_element_type=jnp.float32) + b_ref[0]
    )


def init_pcb_params(key, input_dim, class_num, part=PART):
    """Deterministic parameter init matching the PyTorch __init__.

    BatchNorm1d: weight=1, bias=0 (weights_init_kaiming), running_mean=0, running_var=1.
    Linear(input_dim, class_num, bias=False): weight ~ N(0, 0.001) (weights_init_classifier).
    """
    keys = jax.random.split(key, part)
    gamma = jnp.ones((part, 1, input_dim), jnp.float32)
    beta = jnp.zeros((part, 1, input_dim), jnp.float32)
    run_mean = jnp.zeros((part, 1, input_dim), jnp.float32)
    run_var = jnp.ones((part, 1, input_dim), jnp.float32)
    # PyTorch Linear weight is (class_num, input_dim); we store W^T = (input_dim, class_num).
    cls_w = jnp.stack(
        [0.001 * jax.random.normal(k, (input_dim, class_num), jnp.float32) for k in keys],
        axis=0,
    )  # (part, C, NC)
    return dict(gamma=gamma, beta=beta, run_mean=run_mean, run_var=run_var, cls_w=cls_w)


def _pick_class_tile(nc_pad):
    """Largest lane-dense tile (multiple of 128, up to 512) dividing nc_pad."""
    for tn in (512, 384, 256, 128):
        if nc_pad % tn == 0:
            return tn
    return LANE


@functools.partial(jax.jit, static_argnames=("part",))
def pcb_forward(x_nchw, params, part=PART):
    """PCB head forward. x_nchw: (B, C, H, W) backbone feature map, H % part == 0."""
    B, C, H, W = x_nchw.shape
    assert H % part == 0, "H must be divisible by the number of parts"
    hp = H // part
    NC = params["cls_w"].shape[-1]
    NC_pad = ((NC + LANE - 1) // LANE) * LANE
    TN = _pick_class_tile(NC_pad)

    # --- Pool FIRST, on the contiguous NCHW layout (AdaptiveAvgPool2d((part, 1))) ---
    pooled = x_nchw.reshape(B, C, part, hp * W).mean(axis=-1)     # (B, C, part), f32
    feat_in = jnp.transpose(pooled, (2, 0, 1))                    # (part, B, C)
    # Dropout(0.5) is identity in eval mode.
    feat_bf16 = feat_in.astype(jnp.bfloat16)

    # --- Fold BatchNorm (running stats) into the classifier weight & bias (exact in eval) ---
    s = params["gamma"] * jax.lax.rsqrt(params["run_var"] + BN_EPS)         # (part, 1, C)
    w_folded = params["cls_w"] * jnp.transpose(s, (0, 2, 1))                # (part, C, NC)
    shift = (params["beta"] - params["run_mean"] * s)[:, 0, :]              # (part, C)
    b_folded = jnp.einsum("pc,pcn->pn", shift, params["cls_w"])             # (part, NC)

    # Lane-dense padding of the class dim to a multiple of 128.
    pad = NC_pad - NC
    if pad:
        w_folded = jnp.pad(w_folded, ((0, 0), (0, 0), (0, pad)))
        b_folded = jnp.pad(b_folded, ((0, 0), (0, pad)))
    w_bf16 = w_folded.astype(jnp.bfloat16)                                  # (part, C, NC_pad)
    b_f32 = b_folded[:, None, :]                                            # (part, 1, NC_pad)

    out = pl.pallas_call(
        _pcb_head_kernel,
        out_shape=jax.ShapeDtypeStruct((part, B, NC_pad), jnp.float32),
        grid=(part, NC_pad // TN),
        in_specs=[
            pl.BlockSpec((1, B, C), lambda p, n: (p, 0, 0)),      # pooled features
            pl.BlockSpec((1, C, TN), lambda p, n: (p, 0, n)),     # folded weight tile
            pl.BlockSpec((1, 1, TN), lambda p, n: (p, 0, n)),     # folded bias tile
        ],
        out_specs=pl.BlockSpec((1, B, TN), lambda p, n: (p, 0, n)),
        compiler_params=pltpu.CompilerParams(
            dimension_semantics=("parallel", "parallel"),
        ),
    )(feat_bf16, w_bf16, b_f32)

    logits = out[:, :, :NC]
    # Match the PyTorch module's return type: a list of per-part logits.
    return [logits[i] for i in range(part)]


def _reference(x_nchw, params, part=PART):
    """Pure-JAX f32 reference for a sanity check."""
    B, C, H, W = x_nchw.shape
    hp = H // part
    pooled = x_nchw.reshape(B, C, part, hp, W).mean(axis=(3, 4))   # (B, C, part)
    outs = []
    for i in range(part):
        f = pooled[:, :, i]                                        # (B, C)
        g = params["gamma"][i, 0]
        b = params["beta"][i, 0]
        m = params["run_mean"][i, 0]
        v = params["run_var"][i, 0]
        feat = (f - m) / jnp.sqrt(v + BN_EPS) * g + b
        outs.append(feat @ params["cls_w"][i])
    return outs


if __name__ == "__main__":
    key = jax.random.PRNGKey(0)
    kx, kp = jax.random.split(key)

    # Small shapes consistent with the module: backbone output is (B, 2048, H, W).
    B, C, H, W = 2, 2048, 12, 4
    NUM_CLASSES = 16

    x = jax.random.normal(kx, (B, C, H, W), jnp.float32)
    params = init_pcb_params(kp, C, NUM_CLASSES, part=PART)

    y = pcb_forward(x, params, part=PART)
    for t in y:
        jax.block_until_ready(t)

    # Correctness check against the pure-JAX f32 reference (bf16 weights/features
    # => loosened tolerance).
    ref = _reference(x, params, part=PART)
    for a, b in zip(y, ref):
        assert a.shape == (B, NUM_CLASSES)
        assert jnp.allclose(a, b, atol=5e-3, rtol=5e-2), float(jnp.max(jnp.abs(a - b)))

    print("KERNEL_OK")
</pallas_src>

<mosaic_0001>
module attributes {stable_mosaic.version = 11 : i64} {
  func.func @_pcb_head_kernel(%arg0: i32, %arg1: i32, %arg2: memref<1x2x2048xbf16, #tpu.memory_space<vmem>>, %arg3: memref<1x2048x128xbf16, #tpu.memory_space<vmem>>, %arg4: memref<1x1x128xf32, #tpu.memory_space<vmem>>, %arg5: memref<1x2x128xf32, #tpu.memory_space<vmem>>) attributes {dimension_semantics = [#tpu.dimension_semantics<parallel>, #tpu.dimension_semantics<parallel>], iteration_bounds = array<i64: 6, 1>, scalar_prefetch = 0 : i64, scratch_operands = 0 : i64, tpu.core_type = #tpu.core_type<tc>, window_params = [{transform_indices = @transform_0, window_bounds = array<i64: 1, 2, 2048>}, {transform_indices = @transform_1, window_bounds = array<i64: 1, 2048, 128>}, {transform_indices = @transform_2, window_bounds = array<i64: 1, 1, 128>}, {transform_indices = @transform_3, window_bounds = array<i64: 1, 2, 128>}]} {
    %c0 = arith.constant 0 : index
    %c0_0 = arith.constant 0 : index
    %c0_1 = arith.constant 0 : index
    %0 = vector.load %arg2[%c0, %c0_0, %c0_1] : memref<1x2x2048xbf16, #tpu.memory_space<vmem>>, vector<1x2x2048xbf16>
    %1 = vector.shape_cast %0 : vector<1x2x2048xbf16> to vector<2x2048xbf16>
    %c0_2 = arith.constant 0 : index
    %c0_3 = arith.constant 0 : index
    %c0_4 = arith.constant 0 : index
    %2 = vector.load %arg3[%c0_2, %c0_3, %c0_4] : memref<1x2048x128xbf16, #tpu.memory_space<vmem>>, vector<1x2048x128xbf16>
    %3 = vector.shape_cast %2 : vector<1x2048x128xbf16> to vector<2048x128xbf16>
    %cst = arith.constant dense<0.000000e+00> : vector<2x128xf32>
    %4 = tpu.matmul %1, %3, %cst {dimension_numbers = #tpu.dot_dimension_numbers<[1], [0], [0], [1], [0, 0, 1, 1], [], []>} : vector<2x2048xbf16>, vector<2048x128xbf16>, vector<2x128xf32> -> vector<2x128xf32>
    %c0_5 = arith.constant 0 : index
    %c0_6 = arith.constant 0 : index
    %c0_7 = arith.constant 0 : index
    %5 = vector.load %arg4[%c0_5, %c0_6, %c0_7] : memref<1x1x128xf32, #tpu.memory_space<vmem>>, vector<1x1x128xf32>
    %6 = vector.shape_cast %5 : vector<1x1x128xf32> to vector<1x128xf32>
    %7 = vector.broadcast %6 : vector<1x128xf32> to vector<2x128xf32>
    %8 = arith.addf %4, %7 : vector<2x128xf32>
    %c0_8 = arith.constant 0 : index
    %c0_9 = arith.constant 0 : index
    %c0_10 = arith.constant 0 : index
    %9 = vector.load %arg5[%c0_8, %c0_9, %c0_10] : memref<1x2x128xf32, #tpu.memory_space<vmem>>, vector<1x2x128xf32>
    %10 = vector.shape_cast %9 : vector<1x2x128xf32> to vector<2x128xf32>
    %11 = vector.shape_cast %8 : vector<2x128xf32> to vector<1x2x128xf32>
    tpu.vector_store %arg5[%c0_8, %c0_9, %c0_10], %11 {strides = array<i32>} : memref<1x2x128xf32, #tpu.memory_space<vmem>>, vector<1x2x128xf32>,
    return
  }
  func.func @transform_0(%arg0: i32, %arg1: i32) -> (i32, i32, i32) {
    %c0_i32 = arith.constant 0 : i32
    %c0_i32_0 = arith.constant 0 : i32
    %c0_i32_1 = arith.constant 0 : i32
    return %arg0, %c0_i32, %c0_i32_0 : i32, i32, i32
  }
  func.func @transform_1(%arg0: i32, %arg1: i32) -> (i32, i32, i32) {
    %c0_i32 = arith.constant 0 : i32
    %c0_i32_0 = arith.constant 0 : i32
    return %arg0, %c0_i32, %arg1 : i32, i32, i32
  }
  func.func @transform_2(%arg0: i32, %arg1: i32) -> (i32, i32, i32) {
    %c0_i32 = arith.constant 0 : i32
    %c0_i32_0 = arith.constant 0 : i32
    return %arg0, %c0_i32, %arg1 : i32, i32, i32
  }
  func.func @transform_3(%arg0: i32, %arg1: i32) -> (i32, i32, i32) {
    %c0_i32 = arith.constant 0 : i32
    %c0_i32_0 = arith.constant 0 : i32
    return %arg0, %c0_i32, %arg1 : i32, i32, i32
  }
}

</mosaic_0001>

<llo_original>
// kernel: pcb_forward.1
$region0: #{pcb_forward.1}
  #allocation0 [shape = 'u32[]', space=smem, size = 0x4, offset = 0x4, fixed_abs, tag = 'smem constant byte address 0x4 - core index']
  #allocation1 [shape = 'u32[72,128]{1,0:T(1,128)}', space=vmem, size = 0x9000, scoped, tag = 'internal scratch']
  %s0 = inlined_call_operand.vmem [shape: bf16[6,2,2048], index: 0, kind: input, shape index: {}]
  %s1 = inlined_call_operand.vmem [shape: bf16[6,2048,128], index: 1, kind: input, shape index: {}]
  %s2 = inlined_call_operand.vmem [shape: f32[6,1,128], index: 2, kind: input, shape index: {}]
  %s3 = inlined_call_operand.vmem [shape: f32[6,2,128], index: 3, kind: output, shape index: {}]
  %s4 = sld [smem:[#allocation0]]
  $region45: #{pcb_forward.1} parent=0
    _
  %s6 = ssub.s32 1, %s4
  %s7 = scalar_select 0, %s6, %s4
  loop: start=0, step=1, limit=8
  $region2: #{pcb_forward.1} parent=0 // loop_pre_header
    _
  $region3: #{pcb_forward.1} parent=0 // loop_header
    %s9 = sphi 0, %s13
    %p10 = scmp.ge.s32.totalorder %s9, 8
    %s16 = sphi 0, %s28
    %s17 = sphi 0, %s24
    %s18 = sphi 0, %s16
    %s19 = sphi 0, %s17
    %s20 = sphi 0, %s18
    %s21 = sphi 0, %s19
    %s31 = sphi 0, %s33
    %s34 = sphi 0, %s31
    %s35 = sphi 0, %s34
    %s51 = sphi 0, %s35
    %s59 = sphi 0, %s61
    %s62 = sphi 0, %s59
    %s63 = sphi 0, %s62
    %s79 = sphi 0, %s63
    %s87 = sphi 0, %s89
    %s90 = sphi 0, %s87
    %s91 = sphi 0, %s90
    %s107 = sphi 0, %s91
    %s115 = sphi 0, %s117
    %s118 = sphi 0, %s115
    %s119 = sphi 0, %s118
    %s135 = sphi 0, %s119
  $region4: #{pcb_forward.1} parent=0 // loop_header_branch
    %12 = sbr.rel (%p10) target = $region8
  $region5: #{pcb_forward.1} parent=0 // loop_body
    %s14 = ssub.s32 %s9, 1
    %s15 = ssub.s32 %s9, 2
    %s22 = sadd.s32 1, %s17
    %p23 = scmp.ge.s32.totalorder %s22, 1
    %s24 = scalar_select %p23, 0, %s22
    %s25 = sadd.s32 1, %s16
    %s26 = scalar_select %p23, %s25, %s16
    %p27 = scmp.ge.s32.totalorder %s26, 6
    %s28 = scalar_select %p27, 0, %s26
    %s29 = ssub.s32 %s16, %s28
    %p30 = scmp.eq.s32.totalorder %s29, 0
    %s32 = sadd.s32 %s31, 1
    %s33 = scalar_select %p30, %s31, %s32
    %p36 = pneg %p30
    %p37 = scmp.eq.s32.totalorder %s9, 5
    %p38 = por %p36, %p37
    %p39 = scmp.ne.s32.totalorder %s31, %s34
    %p40 = scmp.eq.s32.totalorder %s9, 0
    %p41 = por %p39, %p40
    %p42 = scmp.ne.s32.totalorder %s31, %s34
    %p43 = scmp.eq.s32.totalorder %s14, 5
    %p44 = por %p42, %p43
    %p45 = scmp.ne.s32.totalorder %s34, %s35
    %p46 = scmp.eq.s32.totalorder %s14, 0
    %p47 = por %p45, %p46
    %p48 = scmp.ne.s32.totalorder %s34, %s35
    %p49 = scmp.eq.s32.totalorder %s15, 5
    %p50 = por %p48, %p49
    %p52 = scmp.ne.s32.totalorder %s35, %s51
    %p53 = scmp.eq.s32.totalorder %s15, 0
    %p54 = por %p52, %p53
    %s55 = ssub.s32 %s16, %s28
    %s56 = ssub.s32 %s17, %s24
    %s57 = sor.u32 %s55, %s56
    %p58 = scmp.eq.s32.totalorder %s57, 0
    %s60 = sadd.s32 %s59, 1
    %s61 = scalar_select %p58, %s59, %s60
    %p64 = pneg %p58
    %p65 = scmp.eq.s32.totalorder %s9, 5
    %p66 = por %p64, %p65
    %p67 = scmp.ne.s32.totalorder %s59, %s62
    %p68 = scmp.eq.s32.totalorder %s9, 0
    %p69 = por %p67, %p68
    %p70 = scmp.ne.s32.totalorder %s59, %s62
    %p71 = scmp.eq.s32.totalorder %s14, 5
    %p72 = por %p70, %p71
    %p73 = scmp.ne.s32.totalorder %s62, %s63
    %p74 = scmp.eq.s32.totalorder %s14, 0
    %p75 = por %p73, %p74
    %p76 = scmp.ne.s32.totalorder %s62, %s63
    %p77 = scmp.eq.s32.totalorder %s15, 5
    %p78 = por %p76, %p77
    %p80 = scmp.ne.s32.totalorder %s63, %s79
    %p81 = scmp.eq.s32.totalorder %s15, 0
    %p82 = por %p80, %p81
    %s83 = ssub.s32 %s16, %s28
    %s84 = ssub.s32 %s17, %s24
    %s85 = sor.u32 %s83, %s84
    %p86 = scmp.eq.s32.totalorder %s85, 0
    %s88 = sadd.s32 %s87, 1
    %s89 = scalar_select %p86, %s87, %s88
    %p92 = pneg %p86
    %p93 = scmp.eq.s32.totalorder %s9, 5
    %p94 = por %p92, %p93
    %p95 = scmp.ne.s32.totalorder %s87, %s90
    %p96 = scmp.eq.s32.totalorder %s9, 0
    %p97 = por %p95, %p96
    %p98 = scmp.ne.s32.totalorder %s87, %s90
    %p99 = scmp.eq.s32.totalorder %s14, 5
    %p100 = por %p98, %p99
    %p101 = scmp.ne.s32.totalorder %s90, %s91
    %p102 = scmp.eq.s32.totalorder %s14, 0
    %p103 = por %p101, %p102
    %p104 = scmp.ne.s32.totalorder %s90, %s91
    %p105 = scmp.eq.s32.totalorder %s15, 5
    %p106 = por %p104, %p105
    %p108 = scmp.ne.s32.totalorder %s91, %s107
    %p109 = scmp.eq.s32.totalorder %s15, 0
    %p110 = por %p108, %p109
    %s111 = ssub.s32 %s16, %s28
    %s112 = ssub.s32 %s17, %s24
    %s113 = sor.u32 %s111, %s112
    %p114 = scmp.eq.s32.totalorder %s113, 0
    %s116 = sadd.s32 %s115, 1
    %s117 = scalar_select %p114, %s115, %s116
    %p120 = pneg %p114
    %p121 = scmp.eq.s32.totalorder %s9, 5
    %p122 = por %p120, %p121
    %p123 = scmp.ne.s32.totalorder %s115, %s118
    %p124 = scmp.eq.s32.totalorder %s9, 0
    %p125 = por %p123, %p124
    %p126 = scmp.ne.s32.totalorder %s115, %s118
    %p127 = scmp.eq.s32.totalorder %s14, 5
    %p128 = por %p126, %p127
    %p129 = scmp.ne.s32.totalorder %s118, %s119
    %p130 = scmp.eq.s32.totalorder %s14, 0
    %p131 = por %p129, %p130
    %p132 = scmp.ne.s32.totalorder %s118, %s119
    %p133 = scmp.eq.s32.totalorder %s15, 5
    %p134 = por %p132, %p133
    %p136 = scmp.ne.s32.totalorder %s119, %s135
    %p137 = scmp.eq.s32.totalorder %s15, 0
    %p138 = por %p136, %p137
    %p139 = scmp.le.s32.totalorder 1, %s9
    %p140 = scmp.lt.s32.totalorder %s9, 7
    %p141 = pnand %p139, %p140
    %p142 = pneg %p141
    // Predicated region
    $region9: #{pcb_forward.1} parent=5 // pred_check
      _
    $region10: #{pcb_forward.1} parent=5 // pred_check_branch
      %144 = sbr.rel (%p141) target = $region12
    $region11: #{pcb_forward.1} parent=5 // pred_region
      %s145 = ssub.s32 %s9, 1
    $region12: #{pcb_forward.1} parent=5 // pred_fallthru
      _
    %p146 = scmp.lt.s32.totalorder %s9, 6
    // Predicated region
    $region13: #{pcb_forward.1} parent=5 // pred_check
      %p147 = pneg %p146
    $region14: #{pcb_forward.1} parent=5 // pred_check_branch
      %149 = sbr.rel (%p147) target = $region16
    $region15: #{pcb_forward.1} parent=5 // pred_region
      // Predicated region
      $region17: #{pcb_forward.1} parent=15 // pred_check
        %p150 = pneg %p41
      $region18: #{pcb_forward.1} parent=15 // pred_check_branch
        %152 = sbr.rel (%p150) target = $region20
      $region19: #{pcb_forward.1} parent=15 // pred_region
        %p153 = scmp.lt.s32.totalorder %s16, 5
        %s154 = scalar_select %p153, %s16, 5
        %s155 = smul.addr %s154, 16
        %s156 = scalar_lea.vmem %s0, %s155
      $region20: #{pcb_forward.1} parent=15 // pred_fallthru
        _
      // Predicated region
      $region21: #{pcb_forward.1} parent=15 // pred_check
        %p157 = pneg %p69
      $region22: #{pcb_forward.1} parent=15 // pred_check_branch
        %159 = sbr.rel (%p157) target = $region24
      $region23: #{pcb_forward.1} parent=15 // pred_region
        %p160 = scmp.lt.s32.totalorder %s16, 5
        %s161 = scalar_select %p160, %s16, 5
        %p162 = scmp.lt.s32.totalorder %s17, 0
        %s163 = scalar_select %p162, %s17, 0
        %s164 = smul.addr %s161, 256
        %s165 = sadd.s32 %s163, %s164
        %s166 = smul.addr %s165, 4
        %s167 = scalar_lea.vmem %s1, %s166
      $region24: #{pcb_forward.1} parent=15 // pred_fallthru
        _
      // Predicated region
      $region25: #{pcb_forward.1} parent=15 // pred_check
        %p168 = pneg %p97
      $region26: #{pcb_forward.1} parent=15 // pred_check_branch
        %170 = sbr.rel (%p168) target = $region28
      $region27: #{pcb_forward.1} parent=15 // pred_region
        %p171 = scmp.lt.s32.totalorder %s16, 5
        %s172 = scalar_select %p171, %s16, 5
        %p173 = scmp.lt.s32.totalorder %s17, 0
        %s174 = scalar_select %p173, %s17, 0
        %s175 = sadd.s32 %s174, %s172
        %s176 = scalar_lea.vmem %s2, %s175
      $region28: #{pcb_forward.1} parent=15 // pred_fallthru
        _
    $region16: #{pcb_forward.1} parent=5 // pred_fallthru
      _
    %p177 = scmp.le.s32.totalorder 1, %s9
    %p178 = scmp.lt.s32.totalorder %s9, 7
    %p179 = pnand %p177, %p178
    %p180 = pneg %p179
    // Predicated region
    $region29: #{pcb_forward.1} parent=5 // pred_check
      _
    $region30: #{pcb_forward.1} parent=5 // pred_check_branch
      %182 = sbr.rel (%p179) target = $region32
    $region31: #{pcb_forward.1} parent=5 // pred_region
      %s183 = ssub.s32 %s9, 1
      %p184 = scmp.lt.s32.totalorder %s18, 5
      %s185 = scalar_select %p184, %s18, 5
      %s186 = smul.addr %s185, 16
      %s187 = scalar_lea.vmem %s0, %s186
      %p188 = pneg %p47
      %p189 = pneg %p44
      %p190 = scmp.lt.s32.totalorder %s18, 5
      %s191 = scalar_select %p190, %s18, 5
      %p192 = scmp.lt.s32.totalorder %s19, 0
      %s193 = scalar_select %p192, %s19, 0
      %s194 = smul.addr %s191, 256
      %s195 = sadd.s32 %s193, %s194
      %s196 = smul.addr %s195, 4
      %s197 = scalar_lea.vmem %s1, %s196
      %p198 = pneg %p75
      %p199 = pneg %p72
      %p200 = scmp.lt.s32.totalorder %s18, 5
      %s201 = scalar_select %p200, %s18, 5
      %p202 = scmp.lt.s32.totalorder %s19, 0
      %s203 = scalar_select %p202, %s19, 0
      %s204 = sadd.s32 %s203, %s201
      %s205 = scalar_lea.vmem %s2, %s204
      %p206 = pneg %p103
      %p207 = pneg %p100
      %p208 = pneg %p131
      %p209 = pneg %p128
      %p210 = scmp.lt.s32.totalorder %s18, 5
      %s211 = scalar_select %p210, %s18, 5
      %p212 = scmp.lt.s32.totalorder %s19, 0
      %s213 = scalar_select %p212, %s19, 0
      %s214 = sadd.s32 %s213, %s211
      %s215 = smul.addr %s214, 2
      %s216 = scalar_lea.vmem %s3, %s215
      %p217 = scmp.lt.s32.totalorder %s18, 5
      %s218 = scalar_select %p217, %s18, 5
      %s219 = smul.addr %s218, 16
      %s220 = scalar_lea.vmem %s0, %s219
      %p221 = scmp.lt.s32.totalorder %s18, 5
      %s222 = scalar_select %p221, %s18, 5
      %p223 = scmp.lt.s32.totalorder %s19, 0
      %s224 = scalar_select %p223, %s19, 0
      %s225 = smul.addr %s222, 256
      %s226 = sadd.s32 %s224, %s225
      %s227 = smul.addr %s226, 4
      %s228 = scalar_lea.vmem %s1, %s227
      %p229 = scmp.lt.s32.totalorder %s18, 5
      %s230 = scalar_select %p229, %s18, 5
      %p231 = scmp.lt.s32.totalorder %s19, 0
      %s232 = scalar_select %p231, %s19, 0
      %s233 = sadd.s32 %s232, %s230
      %s234 = scalar_lea.vmem %s2, %s233
      %p235 = scmp.lt.s32.totalorder %s18, 5
      %s236 = scalar_select %p235, %s18, 5
      %p237 = scmp.lt.s32.totalorder %s19, 0
      %s238 = scalar_select %p237, %s19, 0
      %s239 = sadd.s32 %s238, %s236
      %s240 = smul.addr %s239, 2
      %s241 = scalar_lea.vmem %s3, %s240
      %v242 = vld [vmem:[%s220] sm:$0xff]
      %v243 = vld [vmem:[%s220 + $0x8] sm:$0xff]
      %v244 = vld [vmem:[%s228] sm:$0xf]
      %v245 = vld [vmem:[%s228 + $0x4] sm:$0xf]
      %v246 = vld [vmem:[%s228 + $0x8] sm:$0xf]
      %v247 = vld [vmem:[%s228 + $0xc] sm:$0xf]
      %v248 = vld [vmem:[%s228 + $0x10] sm:$0xf]
      %v249 = vld [vmem:[%s228 + $0x14] sm:$0xf]
      %v250 = vld [vmem:[%s228 + $0x18] sm:$0xf]
      %v251 = vld [vmem:[%s228 + $0x1c] sm:$0xf]
      %v252 = vld [vmem:[%s228 + $0x20] sm:$0xf]
      %v253 = vld [vmem:[%s228 + $0x24] sm:$0xf]
      %v254 = vld [vmem:[%s228 + $0x28] sm:$0xf]
      %v255 = vld [vmem:[%s228 + $0x2c] sm:$0xf]
      %v256 = vld [vmem:[%s228 + $0x30] sm:$0xf]
      %v257 = vld [vmem:[%s228 + $0x34] sm:$0xf]
      %v258 = vld [vmem:[%s228 + $0x38] sm:$0xf]
      %v259 = vld [vmem:[%s228 + $0x3c] sm:$0xf]
      %v260 = vld [vmem:[%s228 + $0x40] sm:$0xf]
      %v261 = vld [vmem:[%s228 + $0x44] sm:$0xf]
      %v262 = vld [vmem:[%s228 + $0x48] sm:$0xf]
      %v263 = vld [vmem:[%s228 + $0x4c] sm:$0xf]
      %v264 = vld [vmem:[%s228 + $0x50] sm:$0xf]
      %v265 = vld [vmem:[%s228 + $0x54] sm:$0xf]
      %v266 = vld [vmem:[%s228 + $0x58] sm:$0xf]
      %v267 = vld [vmem:[%s228 + $0x5c] sm:$0xf]
      %v268 = vld [vmem:[%s228 + $0x60] sm:$0xf]
      %v269 = vld [vmem:[%s228 + $0x64] sm:$0xf]
      %v270 = vld [vmem:[%s228 + $0x68] sm:$0xf]
      %v271 = vld [vmem:[%s228 + $0x6c] sm:$0xf]
      %v272 = vld [vmem:[%s228 + $0x70] sm:$0xf]
      %v273 = vld [vmem:[%s228 + $0x74] sm:$0xf]
      %v274 = vld [vmem:[%s228 + $0x78] sm:$0xf]
      %v275 = vld [vmem:[%s228 + $0x7c] sm:$0xf]
      %v276 = vld [vmem:[%s228 + $0x80] sm:$0xf]
      %v277 = vld [vmem:[%s228 + $0x84] sm:$0xf]
      %v278 = vld [vmem:[%s228 + $0x88] sm:$0xf]
      %v279 = vld [vmem:[%s228 + $0x8c] sm:$0xf]
      %v280 = vld [vmem:[%s228 + $0x90] sm:$0xf]
      %v281 = vld [vmem:[%s228 + $0x94] sm:$0xf]
      %v282 = vld [vmem:[%s228 + $0x98] sm:$0xf]
      %v283 = vld [vmem:[%s228 + $0x9c] sm:$0xf]
      %v284 = vld [vmem:[%s228 + $0xa0] sm:$0xf]
      %v285 = vld [vmem:[%s228 + $0xa4] sm:$0xf]
      %v286 = vld [vmem:[%s228 + $0xa8] sm:$0xf]
      %v287 = vld [vmem:[%s228 + $0xac] sm:$0xf]
      %v288 = vld [vmem:[%s228 + $0xb0] sm:$0xf]
      %v289 = vld [vmem:[%s228 + $0xb4] sm:$0xf]
      %v290 = vld [vmem:[%s228 + $0xb8] sm:$0xf]
      %v291 = vld [vmem:[%s228 + $0xbc] sm:$0xf]
      %v292 = vld [vmem:[%s228 + $0xc0] sm:$0xf]
      %v293 = vld [vmem:[%s228 + $0xc4] sm:$0xf]
      %v294 = vld [vmem:[%s228 + $0xc8] sm:$0xf]
      %v295 = vld [vmem:[%s228 + $0xcc] sm:$0xf]
      %v296 = vld [vmem:[%s228 + $0xd0] sm:$0xf]
      %v297 = vld [vmem:[%s228 + $0xd4] sm:$0xf]
      %v298 = vld [vmem:[%s228 + $0xd8] sm:$0xf]
      %v299 = vld [vmem:[%s228 + $0xdc] sm:$0xf]
      %v300 = vld [vmem:[%s228 + $0xe0] sm:$0xf]
      %v301 = vld [vmem:[%s228 + $0xe4] sm:$0xf]
      %v302 = vld [vmem:[%s228 + $0xe8] sm:$0xf]
      %v303 = vld [vmem:[%s228 + $0xec] sm:$0xf]
      %v304 = vld [vmem:[%s228 + $0xf0] sm:$0xf]
      %v305 = vld [vmem:[%s228 + $0xf4] sm:$0xf]
      %v306 = vld [vmem:[%s228 + $0xf8] sm:$0xf]
      %v307 = vld [vmem:[%s228 + $0xfc] sm:$0xf]
      %v308 = vld [vmem:[%s228 + $0x100] sm:$0xf]
      %v309 = vld [vmem:[%s228 + $0x104] sm:$0xf]
      %v310 = vld [vmem:[%s228 + $0x108] sm:$0xf]
      %v311 = vld [vmem:[%s228 + $0x10c] sm:$0xf]
      %v312 = vld [vmem:[%s228 + $0x110] sm:$0xf]
      %v313 = vld [vmem:[%s228 + $0x114] sm:$0xf]
      %v314 = vld [vmem:[%s228 + $0x118] sm:$0xf]
      %v315 = vld [vmem:[%s228 + $0x11c] sm:$0xf]
      %v316 = vld [vmem:[%s228 + $0x120] sm:$0xf]
      %v317 = vld [vmem:[%s228 + $0x124] sm:$0xf]
      %v318 = vld [vmem:[%s228 + $0x128] sm:$0xf]
      %v319 = vld [vmem:[%s228 + $0x12c] sm:$0xf]
      %v320 = vld [vmem:[%s228 + $0x130] sm:$0xf]
      %v321 = vld [vmem:[%s228 + $0x134] sm:$0xf]
      %v322 = vld [vmem:[%s228 + $0x138] sm:$0xf]
      %v323 = vld [vmem:[%s228 + $0x13c] sm:$0xf]
      %v324 = vld [vmem:[%s228 + $0x140] sm:$0xf]
      %v325 = vld [vmem:[%s228 + $0x144] sm:$0xf]
      %v326 = vld [vmem:[%s228 + $0x148] sm:$0xf]
      %v327 = vld [vmem:[%s228 + $0x14c] sm:$0xf]
      %v328 = vld [vmem:[%s228 + $0x150] sm:$0xf]
      %v329 = vld [vmem:[%s228 + $0x154] sm:$0xf]
      %v330 = vld [vmem:[%s228 + $0x158] sm:$0xf]
      %v331 = vld [vmem:[%s228 + $0x15c] sm:$0xf]
      %v332 = vld [vmem:[%s228 + $0x160] sm:$0xf]
      %v333 = vld [vmem:[%s228 + $0x164] sm:$0xf]
      %v334 = vld [vmem:[%s228 + $0x168] sm:$0xf]
      %v335 = vld [vmem:[%s228 + $0x16c] sm:$0xf]
      %v336 = vld [vmem:[%s228 + $0x170] sm:$0xf]
      %v337 = vld [vmem:[%s228 + $0x174] sm:$0xf]
      %v338 = vld [vmem:[%s228 + $0x178] sm:$0xf]
      %v339 = vld [vmem:[%s228 + $0x17c] sm:$0xf]
      %v340 = vld [vmem:[%s228 + $0x180] sm:$0xf]
      %v341 = vld [vmem:[%s228 + $0x184] sm:$0xf]
      %v342 = vld [vmem:[%s228 + $0x188] sm:$0xf]
      %v343 = vld [vmem:[%s228 + $0x18c] sm:$0xf]
      %v344 = vld [vmem:[%s228 + $0x190] sm:$0xf]
      %v345 = vld [vmem:[%s228 + $0x194] sm:$0xf]
      %v346 = vld [vmem:[%s228 + $0x198] sm:$0xf]
      %v347 = vld [vmem:[%s228 + $0x19c] sm:$0xf]
      %v348 = vld [vmem:[%s228 + $0x1a0] sm:$0xf]
      %v349 = vld [vmem:[%s228 + $0x1a4] sm:$0xf]
      %v350 = vld [vmem:[%s228 + $0x1a8] sm:$0xf]
      %v351 = vld [vmem:[%s228 + $0x1ac] sm:$0xf]
      %v352 = vld [vmem:[%s228 + $0x1b0] sm:$0xf]
      %v353 = vld [vmem:[%s228 + $0x1b4] sm:$0xf]
      %v354 = vld [vmem:[%s228 + $0x1b8] sm:$0xf]
      %v355 = vld [vmem:[%s228 + $0x1bc] sm:$0xf]
      %v356 = vld [vmem:[%s228 + $0x1c0] sm:$0xf]
      %v357 = vld [vmem:[%s228 + $0x1c4] sm:$0xf]
      %v358 = vld [vmem:[%s228 + $0x1c8] sm:$0xf]
      %v359 = vld [vmem:[%s228 + $0x1cc] sm:$0xf]
      %v360 = vld [vmem:[%s228 + $0x1d0] sm:$0xf]
      %v361 = vld [vmem:[%s228 + $0x1d4] sm:$0xf]
      %v362 = vld [vmem:[%s228 + $0x1d8] sm:$0xf]
      %v363 = vld [vmem:[%s228 + $0x1dc] sm:$0xf]
      %v364 = vld [vmem:[%s228 + $0x1e0] sm:$0xf]
      %v365 = vld [vmem:[%s228 + $0x1e4] sm:$0xf]
      %v366 = vld [vmem:[%s228 + $0x1e8] sm:$0xf]
      %v367 = vld [vmem:[%s228 + $0x1ec] sm:$0xf]
      %v368 = vld [vmem:[%s228 + $0x1f0] sm:$0xf]
      %v369 = vld [vmem:[%s228 + $0x1f4] sm:$0xf]
      %v370 = vld [vmem:[%s228 + $0x1f8] sm:$0xf]
      %v371 = vld [vmem:[%s228 + $0x1fc] sm:$0xf]
      %v372 = vld [vmem:[%s228 + $0x200] sm:$0xf]
      %v373 = vld [vmem:[%s228 + $0x204] sm:$0xf]
      %v374 = vld [vmem:[%s228 + $0x208] sm:$0xf]
      %v375 = vld [vmem:[%s228 + $0x20c] sm:$0xf]
      %v376 = vld [vmem:[%s228 + $0x210] sm:$0xf]
      %v377 = vld [vmem:[%s228 + $0x214] sm:$0xf]
      %v378 = vld [vmem:[%s228 + $0x218] sm:$0xf]
      %v379 = vld [vmem:[%s228 + $0x21c] sm:$0xf]
      %v380 = vld [vmem:[%s228 + $0x220] sm:$0xf]
      %v381 = vld [vmem:[%s228 + $0x224] sm:$0xf]
      %v382 = vld [vmem:[%s228 + $0x228] sm:$0xf]
      %v383 = vld [vmem:[%s228 + $0x22c] sm:$0xf]
      %v384 = vld [vmem:[%s228 + $0x230] sm:$0xf]
      %v385 = vld [vmem:[%s228 + $0x234] sm:$0xf]
      %v386 = vld [vmem:[%s228 + $0x238] sm:$0xf]
      %v387 = vld [vmem:[%s228 + $0x23c] sm:$0xf]
      %v388 = vld [vmem:[%s228 + $0x240] sm:$0xf]
      %v389 = vld [vmem:[%s228 + $0x244] sm:$0xf]
      %v390 = vld [vmem:[%s228 + $0x248] sm:$0xf]
      %v391 = vld [vmem:[%s228 + $0x24c] sm:$0xf]
      %v392 = vld [vmem:[%s228 + $0x250] sm:$0xf]
      %v393 = vld [vmem:[%s228 + $0x254] sm:$0xf]
      %v394 = vld [vmem:[%s228 + $0x258] sm:$0xf]
      %v395 = vld [vmem:[%s228 + $0x25c] sm:$0xf]
      %v396 = vld [vmem:[%s228 + $0x260] sm:$0xf]
      %v397 = vld [vmem:[%s228 + $0x264] sm:$0xf]
      %v398 = vld [vmem:[%s228 + $0x268] sm:$0xf]
      %v399 = vld [vmem:[%s228 + $0x26c] sm:$0xf]
      %v400 = vld [vmem:[%s228 + $0x270] sm:$0xf]
      %v401 = vld [vmem:[%s228 + $0x274] sm:$0xf]
      %v402 = vld [vmem:[%s228 + $0x278] sm:$0xf]
      %v403 = vld [vmem:[%s228 + $0x27c] sm:$0xf]
      %v404 = vld [vmem:[%s228 + $0x280] sm:$0xf]
      %v405 = vld [vmem:[%s228 + $0x284] sm:$0xf]
      %v406 = vld [vmem:[%s228 + $0x288] sm:$0xf]
      %v407 = vld [vmem:[%s228 + $0x28c] sm:$0xf]
      %v408 = vld [vmem:[%s228 + $0x290] sm:$0xf]
      %v409 = vld [vmem:[%s228 + $0x294] sm:$0xf]
      %v410 = vld [vmem:[%s228 + $0x298] sm:$0xf]
      %v411 = vld [vmem:[%s228 + $0x29c] sm:$0xf]
      %v412 = vld [vmem:[%s228 + $0x2a0] sm:$0xf]
      %v413 = vld [vmem:[%s228 + $0x2a4] sm:$0xf]
      %v414 = vld [vmem:[%s228 + $0x2a8] sm:$0xf]
      %v415 = vld [vmem:[%s228 + $0x2ac] sm:$0xf]
      %v416 = vld [vmem:[%s228 + $0x2b0] sm:$0xf]
      %v417 = vld [vmem:[%s228 + $0x2b4] sm:$0xf]
      %v418 = vld [vmem:[%s228 + $0x2b8] sm:$0xf]
      %v419 = vld [vmem:[%s228 + $0x2bc] sm:$0xf]
      %v420 = vld [vmem:[%s228 + $0x2c0] sm:$0xf]
      %v421 = vld [vmem:[%s228 + $0x2c4] sm:$0xf]
      %v422 = vld [vmem:[%s228 + $0x2c8] sm:$0xf]
      %v423 = vld [vmem:[%s228 + $0x2cc] sm:$0xf]
      %v424 = vld [vmem:[%s228 + $0x2d0] sm:$0xf]
      %v425 = vld [vmem:[%s228 + $0x2d4] sm:$0xf]
      %v426 = vld [vmem:[%s228 + $0x2d8] sm:$0xf]
      %v427 = vld [vmem:[%s228 + $0x2dc] sm:$0xf]
      %v428 = vld [vmem:[%s228 + $0x2e0] sm:$0xf]
      %v429 = vld [vmem:[%s228 + $0x2e4] sm:$0xf]
      %v430 = vld [vmem:[%s228 + $0x2e8] sm:$0xf]
      %v431 = vld [vmem:[%s228 + $0x2ec] sm:$0xf]
      %v432 = vld [vmem:[%s228 + $0x2f0] sm:$0xf]
      %v433 = vld [vmem:[%s228 + $0x2f4] sm:$0xf]
      %v434 = vld [vmem:[%s228 + $0x2f8] sm:$0xf]
      %v435 = vld [vmem:[%s228 + $0x2fc] sm:$0xf]
      %v436 = vld [vmem:[%s228 + $0x300] sm:$0xf]
      %v437 = vld [vmem:[%s228 + $0x304] sm:$0xf]
      %v438 = vld [vmem:[%s228 + $0x308] sm:$0xf]
      %v439 = vld [vmem:[%s228 + $0x30c] sm:$0xf]
      %v440 = vld [vmem:[%s228 + $0x310] sm:$0xf]
      %v441 = vld [vmem:[%s228 + $0x314] sm:$0xf]
      %v442 = vld [vmem:[%s228 + $0x318] sm:$0xf]
      %v443 = vld [vmem:[%s228 + $0x31c] sm:$0xf]
      %v444 = vld [vmem:[%s228 + $0x320] sm:$0xf]
      %v445 = vld [vmem:[%s228 + $0x324] sm:$0xf]
      %v446 = vld [vmem:[%s228 + $0x328] sm:$0xf]
      %v447 = vld [vmem:[%s228 + $0x32c] sm:$0xf]
      %v448 = vld [vmem:[%s228 + $0x330] sm:$0xf]
      %v449 = vld [vmem:[%s228 + $0x334] sm:$0xf]
      %v450 = vld [vmem:[%s228 + $0x338] sm:$0xf]
      %v451 = vld [vmem:[%s228 + $0x33c] sm:$0xf]
      %v452 = vld [vmem:[%s228 + $0x340] sm:$0xf]
      %v453 = vld [vmem:[%s228 + $0x344] sm:$0xf]
      %v454 = vld [vmem:[%s228 + $0x348] sm:$0xf]
      %v455 = vld [vmem:[%s228 + $0x34c] sm:$0xf]
      %v456 = vld [vmem:[%s228 + $0x350] sm:$0xf]
      %v457 = vld [vmem:[%s228 + $0x354] sm:$0xf]
      %v458 = vld [vmem:[%s228 + $0x358] sm:$0xf]
      %v459 = vld [vmem:[%s228 + $0x35c] sm:$0xf]
      %v460 = vld [vmem:[%s228 + $0x360] sm:$0xf]
      %v461 = vld [vmem:[%s228 + $0x364] sm:$0xf]
      %v462 = vld [vmem:[%s228 + $0x368] sm:$0xf]
      %v463 = vld [vmem:[%s228 + $0x36c] sm:$0xf]
      %v464 = vld [vmem:[%s228 + $0x370] sm:$0xf]
      %v465 = vld [vmem:[%s228 + $0x374] sm:$0xf]
      %v466 = vld [vmem:[%s228 + $0x378] sm:$0xf]
      %v467 = vld [vmem:[%s228 + $0x37c] sm:$0xf]
      %v468 = vld [vmem:[%s228 + $0x380] sm:$0xf]
      %v469 = vld [vmem:[%s228 + $0x384] sm:$0xf]
      %v470 = vld [vmem:[%s228 + $0x388] sm:$0xf]
      %v471 = vld [vmem:[%s228 + $0x38c] sm:$0xf]
      %v472 = vld [vmem:[%s228 + $0x390] sm:$0xf]
      %v473 = vld [vmem:[%s228 + $0x394] sm:$0xf]
      %v474 = vld [vmem:[%s228 + $0x398] sm:$0xf]
      %v475 = vld [vmem:[%s228 + $0x39c] sm:$0xf]
      %v476 = vld [vmem:[%s228 + $0x3a0] sm:$0xf]
      %v477 = vld [vmem:[%s228 + $0x3a4] sm:$0xf]
      %v478 = vld [vmem:[%s228 + $0x3a8] sm:$0xf]
      %v479 = vld [vmem:[%s228 + $0x3ac] sm:$0xf]
      %v480 = vld [vmem:[%s228 + $0x3b0] sm:$0xf]
      %v481 = vld [vmem:[%s228 + $0x3b4] sm:$0xf]
      %v482 = vld [vmem:[%s228 + $0x3b8] sm:$0xf]
      %v483 = vld [vmem:[%s228 + $0x3bc] sm:$0xf]
      %v484 = vld [vmem:[%s228 + $0x3c0] sm:$0xf]
      %v485 = vld [vmem:[%s228 + $0x3c4] sm:$0xf]
      %v486 = vld [vmem:[%s228 + $0x3c8] sm:$0xf]
      %v487 = vld [vmem:[%s228 + $0x3cc] sm:$0xf]
      %v488 = vld [vmem:[%s228 + $0x3d0] sm:$0xf]
      %v489 = vld [vmem:[%s228 + $0x3d4] sm:$0xf]
      %v490 = vld [vmem:[%s228 + $0x3d8] sm:$0xf]
      %v491 = vld [vmem:[%s228 + $0x3dc] sm:$0xf]
      %v492 = vld [vmem:[%s228 + $0x3e0] sm:$0xf]
      %v493 = vld [vmem:[%s228 + $0x3e4] sm:$0xf]
      %v494 = vld [vmem:[%s228 + $0x3e8] sm:$0xf]
      %v495 = vld [vmem:[%s228 + $0x3ec] sm:$0xf]
      %v496 = vld [vmem:[%s228 + $0x3f0] sm:$0xf]
      %v497 = vld [vmem:[%s228 + $0x3f4] sm:$0xf]
      %v498 = vld [vmem:[%s228 + $0x3f8] sm:$0xf]
      %v499 = vld [vmem:[%s228 + $0x3fc] sm:$0xf]
      %v500 = vld [vmem:[%s234] sm:$0x1]
      %v502 = vperm.slane %v500, 0
      %505 = vst [vmem:[#allocation1] ss:$9 sm:$0xff] %v242
      %v506 = vld [vmem:[#allocation1] sm:$0xff]
      %v507 = vld [vmem:[#allocation1 + $0x9] sm:$0xff]
      %v508 = vld [vmem:[#allocation1 + $0x12] sm:$0xff]
      %v509 = vld [vmem:[#allocation1 + $0x1b] sm:$0xff]
      %v510 = vld [vmem:[#allocation1 + $0x24] sm:$0xff]
      %v511 = vld [vmem:[#allocation1 + $0x2d] sm:$0xff]
      %v512 = vld [vmem:[#allocation1 + $0x36] sm:$0xff]
      %v513 = vld [vmem:[#allocation1 + $0x3f] sm:$0xff]
      %515 = vst [vmem:[#allocation1] ss:$9 sm:$0xff] %v243
      %v516 = vld [vmem:[#allocation1] sm:$0xff]
      %v517 = vld [vmem:[#allocation1 + $0x9] sm:$0xff]
      %v518 = vld [vmem:[#allocation1 + $0x12] sm:$0xff]
      %v519 = vld [vmem:[#allocation1 + $0x1b] sm:$0xff]
      %v520 = vld [vmem:[#allocation1 + $0x24] sm:$0xff]
      %v521 = vld [vmem:[#allocation1 + $0x2d] sm:$0xff]
      %v522 = vld [vmem:[#allocation1 + $0x36] sm:$0xff]
      %v523 = vld [vmem:[#allocation1 + $0x3f] sm:$0xff]
      %v796 = vunpack.c.l.b16 %v244
      %v797 = vunpack.c.l.b16 %v245
      %v798 = vunpack.c.l.b16 %v246
      %v799 = vunpack.c.l.b16 %v247
      %v800 = vunpack.c.l.b16 %v248
      %v801 = vunpack.c.l.b16 %v249
      %v802 = vunpack.c.l.b16 %v250
      %v803 = vunpack.c.l.b16 %v251
      %v804 = vunpack.c.l.b16 %v252
      %v805 = vunpack.c.l.b16 %v253
      %v806 = vunpack.c.l.b16 %v254
      %v807 = vunpack.c.l.b16 %v255
      %v808 = vunpack.c.l.b16 %v256
      %v809 = vunpack.c.l.b16 %v257
      %v810 = vunpack.c.l.b16 %v258
      %v811 = vunpack.c.l.b16 %v259
      %v812 = vunpack.c.l.b16 %v260
      %v813 = vunpack.c.l.b16 %v261
      %v814 = vunpack.c.l.b16 %v262
      %v815 = vunpack.c.l.b16 %v263
      %v816 = vunpack.c.l.b16 %v264
      %v817 = vunpack.c.l.b16 %v265
      %v818 = vunpack.c.l.b16 %v266
      %v819 = vunpack.c.l.b16 %v267
      %v820 = vunpack.c.l.b16 %v268
      %v821 = vunpack.c.l.b16 %v269
      %v822 = vunpack.c.l.b16 %v270
      %v823 = vunpack.c.l.b16 %v271
      %v824 = vunpack.c.l.b16 %v272
      %v825 = vunpack.c.l.b16 %v273
      %v826 = vunpack.c.l.b16 %v274
      %v827 = vunpack.c.l.b16 %v275
      %v828 = vunpack.c.l.b16 %v276
      %v829 = vunpack.c.l.b16 %v277
      %v830 = vunpack.c.l.b16 %v278
      %v831 = vunpack.c.l.b16 %v279
      %v832 = vunpack.c.l.b16 %v280
      %v833 = vunpack.c.l.b16 %v281
      %v834 = vunpack.c.l.b16 %v282
      %v835 = vunpack.c.l.b16 %v283
      %v836 = vunpack.c.l.b16 %v284
      %v837 = vunpack.c.l.b16 %v285
      %v838 = vunpack.c.l.b16 %v286
      %v839 = vunpack.c.l.b16 %v287
      %v840 = vunpack.c.l.b16 %v288
      %v841 = vunpack.c.l.b16 %v289
      %v842 = vunpack.c.l.b16 %v290
      %v843 = vunpack.c.l.b16 %v291
      %v844 = vunpack.c.l.b16 %v292
      %v845 = vunpack.c.l.b16 %v293
      %v846 = vunpack.c.l.b16 %v294
      %v847 = vunpack.c.l.b16 %v295
      %v848 = vunpack.c.l.b16 %v296
      %v849 = vunpack.c.l.b16 %v297
      %v850 = vunpack.c.l.b16 %v298
      %v851 = vunpack.c.l.b16 %v299
      %v852 = vunpack.c.l.b16 %v300
      %v853 = vunpack.c.l.b16 %v301
      %v854 = vunpack.c.l.b16 %v302
      %v855 = vunpack.c.l.b16 %v303
      %v856 = vunpack.c.l.b16 %v304
      %v857 = vunpack.c.l.b16 %v305
      %v858 = vunpack.c.l.b16 %v306
      %v859 = vunpack.c.l.b16 %v307
      %v860 = vunpack.c.l.b16 %v308
      %v861 = vunpack.c.l.b16 %v309
      %v862 = vunpack.c.l.b16 %v310
      %v863 = vunpack.c.l.b16 %v311
      %v864 = vunpack.c.l.b16 %v312
      %v865 = vunpack.c.l.b16 %v313
      %v866 = vunpack.c.l.b16 %v314
      %v867 = vunpack.c.l.b16 %v315
      %v868 = vunpack.c.l.b16 %v316
      %v869 = vunpack.c.l.b16 %v317
      %v870 = vunpack.c.l.b16 %v318
      %v871 = vunpack.c.l.b16 %v319
      %v872 = vunpack.c.l.b16 %v320
      %v873 = vunpack.c.l.b16 %v321
      %v874 = vunpack.c.l.b16 %v322
      %v875 = vunpack.c.l.b16 %v323
      %v876 = vunpack.c.l.b16 %v324
      %v877 = vunpack.c.l.b16 %v325
      %v878 = vunpack.c.l.b16 %v326
      %v879 = vunpack.c.l.b16 %v327
      %v880 = vunpack.c.l.b16 %v328
      %v881 = vunpack.c.l.b16 %v329
      %v882 = vunpack.c.l.b16 %v330
      %v883 = vunpack.c.l.b16 %v331
      %v884 = vunpack.c.l.b16 %v332
      %v885 = vunpack.c.l.b16 %v333
      %v886 = vunpack.c.l.b16 %v334
      %v887 = vunpack.c.l.b16 %v335
      %v888 = vunpack.c.l.b16 %v336
      %v889 = vunpack.c.l.b16 %v337
      %v890 = vunpack.c.l.b16 %v338
      %v891 = vunpack.c.l.b16 %v339
      %v892 = vunpack.c.l.b16 %v340
      %v893 = vunpack.c.l.b16 %v341
      %v894 = vunpack.c.l.b16 %v342
      %v895 = vunpack.c.l.b16 %v343
      %v896 = vunpack.c.l.b16 %v344
      %v897 = vunpack.c.l.b16 %v345
      %v898 = vunpack.c.l.b16 %v346
      %v899 = vunpack.c.l.b16 %v347
      %v900 = vunpack.c.l.b16 %v348
      %v901 = vunpack.c.l.b16 %v349
      %v902 = vunpack.c.l.b16 %v350
      %v903 = vunpack.c.l.b16 %v351
      %v904 = vunpack.c.l.b16 %v352
      %v905 = vunpack.c.l.b16 %v353
      %v906 = vunpack.c.l.b16 %v354
      %v907 = vunpack.c.l.b16 %v355
      %v908 = vunpack.c.l.b16 %v356
      %v909 = vunpack.c.l.b16 %v357
      %v910 = vunpack.c.l.b16 %v358
      %v911 = vunpack.c.l.b16 %v359
      %v912 = vunpack.c.l.b16 %v360
      %v913 = vunpack.c.l.b16 %v361
      %v914 = vunpack.c.l.b16 %v362
      %v915 = vunpack.c.l.b16 %v363
      %v916 = vunpack.c.l.b16 %v364
      %v917 = vunpack.c.l.b16 %v365
      %v918 = vunpack.c.l.b16 %v366
      %v919 = vunpack.c.l.b16 %v367
      %v920 = vunpack.c.l.b16 %v368
      %v921 = vunpack.c.l.b16 %v369
      %v922 = vunpack.c.l.b16 %v370
      %v923 = vunpack.c.l.b16 %v371
      %v924 = vunpack.c.l.b16 %v372
      %v925 = vunpack.c.l.b16 %v373
      %v926 = vunpack.c.l.b16 %v374
      %v927 = vunpack.c.l.b16 %v375
      %v928 = vunpack.c.l.b16 %v376
      %v929 = vunpack.c.l.b16 %v377
      %v930 = vunpack.c.l.b16 %v378
      %v931 = vunpack.c.l.b16 %v379
      %v932 = vunpack.c.l.b16 %v380
      %v933 = vunpack.c.l.b16 %v381
      %v934 = vunpack.c.l.b16 %v382
      %v935 = vunpack.c.l.b16 %v383
      %v936 = vunpack.c.l.b16 %v384
      %v937 = vunpack.c.l.b16 %v385
      %v938 = vunpack.c.l.b16 %v386
      %v939 = vunpack.c.l.b16 %v387
      %v940 = vunpack.c.l.b16 %v388
      %v941 = vunpack.c.l.b16 %v389
      %v942 = vunpack.c.l.b16 %v390
      %v943 = vunpack.c.l.b16 %v391
      %v944 = vunpack.c.l.b16 %v392
      %v945 = vunpack.c.l.b16 %v393
      %v946 = vunpack.c.l.b16 %v394
      %v947 = vunpack.c.l.b16 %v395
      %v948 = vunpack.c.l.b16 %v396
      %v949 = vunpack.c.l.b16 %v397
      %v950 = vunpack.c.l.b16 %v398
      %v951 = vunpack.c.l.b16 %v399
      %v952 = vunpack.c.l.b16 %v400
      %v953 = vunpack.c.l.b16 %v401
      %v954 = vunpack.c.l.b16 %v402
      %v955 = vunpack.c.l.b16 %v403
      %v956 = vunpack.c.l.b16 %v404
      %v957 = vunpack.c.l.b16 %v405
      %v958 = vunpack.c.l.b16 %v406
      %v959 = vunpack.c.l.b16 %v407
      %v960 = vunpack.c.l.b16 %v408
      %v961 = vunpack.c.l.b16 %v409
      %v962 = vunpack.c.l.b16 %v410
      %v963 = vunpack.c.l.b16 %v411
      %v964 = vunpack.c.l.b16 %v412
      %v965 = vunpack.c.l.b16 %v413
      %v966 = vunpack.c.l.b16 %v414
      %v967 = vunpack.c.l.b16 %v415
      %v968 = vunpack.c.l.b16 %v416
      %v969 = vunpack.c.l.b16 %v417
      %v970 = vunpack.c.l.b16 %v418
      %v971 = vunpack.c.l.b16 %v419
      %v972 = vunpack.c.l.b16 %v420
      %v973 = vunpack.c.l.b16 %v421
      %v974 = vunpack.c.l.b16 %v422
      %v975 = vunpack.c.l.b16 %v423
      %v976 = vunpack.c.l.b16 %v424
      %v977 = vunpack.c.l.b16 %v425
      %v978 = vunpack.c.l.b16 %v426
      %v979 = vunpack.c.l.b16 %v427
      %v980 = vunpack.c.l.b16 %v428
      %v981 = vunpack.c.l.b16 %v429
      %v982 = vunpack.c.l.b16 %v430
      %v983 = vunpack.c.l.b16 %v431
      %v984 = vunpack.c.l.b16 %v432
      %v985 = vunpack.c.l.b16 %v433
      %v986 = vunpack.c.l.b16 %v434
      %v987 = vunpack.c.l.b16 %v435
      %v988 = vunpack.c.l.b16 %v436
      %v989 = vunpack.c.l.b16 %v437
      %v990 = vunpack.c.l.b16 %v438
      %v991 = vunpack.c.l.b16 %v439
      %v992 = vunpack.c.l.b16 %v440
      %v993 = vunpack.c.l.b16 %v441
      %v994 = vunpack.c.l.b16 %v442
      %v995 = vunpack.c.l.b16 %v443
      %v996 = vunpack.c.l.b16 %v444
      %v997 = vunpack.c.l.b16 %v445
      %v998 = vunpack.c.l.b16 %v446
      %v999 = vunpack.c.l.b16 %v447
      %v1000 = vunpack.c.l.b16 %v448
      %v1001 = vunpack.c.l.b16 %v449
      %v1002 = vunpack.c.l.b16 %v450
      %v1003 = vunpack.c.l.b16 %v451
      %v1004 = vunpack.c.l.b16 %v452
      %v1005 = vunpack.c.l.b16 %v453
      %v1006 = vunpack.c.l.b16 %v454
      %v1007 = vunpack.c.l.b16 %v455
      %v1008 = vunpack.c.l.b16 %v456
      %v1009 = vunpack.c.l.b16 %v457
      %v1010 = vunpack.c.l.b16 %v458
      %v1011 = vunpack.c.l.b16 %v459
      %v1012 = vunpack.c.l.b16 %v460
      %v1013 = vunpack.c.l.b16 %v461
      %v1014 = vunpack.c.l.b16 %v462
      %v1015 = vunpack.c.l.b16 %v463
      %v1016 = vunpack.c.l.b16 %v464
      %v1017 = vunpack.c.l.b16 %v465
      %v1018 = vunpack.c.l.b16 %v466
      %v1019 = vunpack.c.l.b16 %v467
      %v1020 = vunpack.c.l.b16 %v468
      %v1021 = vunpack.c.l.b16 %v469
      %v1022 = vunpack.c.l.b16 %v470
      %v1023 = vunpack.c.l.b16 %v471
      %v1024 = vunpack.c.l.b16 %v472
      %v1025 = vunpack.c.l.b16 %v473
      %v1026 = vunpack.c.l.b16 %v474
      %v1027 = vunpack.c.l.b16 %v475
      %v1028 = vunpack.c.l.b16 %v476
      %v1029 = vunpack.c.l.b16 %v477
      %v1030 = vunpack.c.l.b16 %v478
      %v1031 = vunpack.c.l.b16 %v479
      %v1032 = vunpack.c.l.b16 %v480
      %v1033 = vunpack.c.l.b16 %v481
      %v1034 = vunpack.c.l.b16 %v482
      %v1035 = vunpack.c.l.b16 %v483
      %v1036 = vunpack.c.l.b16 %v484
      %v1037 = vunpack.c.l.b16 %v485
      %v1038 = vunpack.c.l.b16 %v486
      %v1039 = vunpack.c.l.b16 %v487
      %v1040 = vunpack.c.l.b16 %v488
      %v1041 = vunpack.c.l.b16 %v489
      %v1042 = vunpack.c.l.b16 %v490
      %v1043 = vunpack.c.l.b16 %v491
      %v1044 = vunpack.c.l.b16 %v492
      %v1045 = vunpack.c.l.b16 %v493
      %v1046 = vunpack.c.l.b16 %v494
      %v1047 = vunpack.c.l.b16 %v495
      %v1048 = vunpack.c.l.b16 %v496
      %v1049 = vunpack.c.l.b16 %v497
      %v1050 = vunpack.c.l.b16 %v498
      %v1051 = vunpack.c.l.b16 %v499
      %v1052 = vpack.c.b16 %v797, %v796
      %v1053 = vpack.c.b16 %v799, %v798
      %v1054 = vpack.c.b16 %v801, %v800
      %v1055 = vpack.c.b16 %v803, %v802
      %v1056 = vpack.c.b16 %v805, %v804
      %v1057 = vpack.c.b16 %v807, %v806
      %v1058 = vpack.c.b16 %v809, %v808
      %v1059 = vpack.c.b16 %v811, %v810
      %v1060 = vpack.c.b16 %v813, %v812
      %v1061 = vpack.c.b16 %v815, %v814
      %v1062 = vpack.c.b16 %v817, %v816
      %v1063 = vpack.c.b16 %v819, %v818
      %v1064 = vpack.c.b16 %v821, %v820
      %v1065 = vpack.c.b16 %v823, %v822
      %v1066 = vpack.c.b16 %v825, %v824
      %v1067 = vpack.c.b16 %v827, %v826
      %v1068 = vpack.c.b16 %v829, %v828
      %v1069 = vpack.c.b16 %v831, %v830
      %v1070 = vpack.c.b16 %v833, %v832
      %v1071 = vpack.c.b16 %v835, %v834
      %v1072 = vpack.c.b16 %v837, %v836
      %v1073 = vpack.c.b16 %v839, %v838
      %v1074 = vpack.c.b16 %v841, %v840
      %v1075 = vpack.c.b16 %v843, %v842
      %v1076 = vpack.c.b16 %v845, %v844
      %v1077 = vpack.c.b16 %v847, %v846
      %v1078 = vpack.c.b16 %v849, %v848
      %v1079 = vpack.c.b16 %v851, %v850
      %v1080 = vpack.c.b16 %v853, %v852
      %v1081 = vpack.c.b16 %v855, %v854
      %v1082 = vpack.c.b16 %v857, %v856
      %v1083 = vpack.c.b16 %v859, %v858
      %v1084 = vpack.c.b16 %v861, %v860
      %v1085 = vpack.c.b16 %v863, %v862
      %v1086 = vpack.c.b16 %v865, %v864
      %v1087 = vpack.c.b16 %v867, %v866
      %v1088 = vpack.c.b16 %v869, %v868
      %v1089 = vpack.c.b16 %v871, %v870
      %v1090 = vpack.c.b16 %v873, %v872
      %v1091 = vpack.c.b16 %v875, %v874
      %v1092 = vpack.c.b16 %v877, %v876
      %v1093 = vpack.c.b16 %v879, %v878
      %v1094 = vpack.c.b16 %v881, %v880
      %v1095 = vpack.c.b16 %v883, %v882
      %v1096 = vpack.c.b16 %v885, %v884
      %v1097 = vpack.c.b16 %v887, %v886
      %v1098 = vpack.c.b16 %v889, %v888
      %v1099 = vpack.c.b16 %v891, %v890
      %v1100 = vpack.c.b16 %v893, %v892
      %v1101 = vpack.c.b16 %v895, %v894
      %v1102 = vpack.c.b16 %v897, %v896
      %v1103 = vpack.c.b16 %v899, %v898
      %v1104 = vpack.c.b16 %v901, %v900
      %v1105 = vpack.c.b16 %v903, %v902
      %v1106 = vpack.c.b16 %v905, %v904
      %v1107 = vpack.c.b16 %v907, %v906
      %v1108 = vpack.c.b16 %v909, %v908
      %v1109 = vpack.c.b16 %v911, %v910
      %v1110 = vpack.c.b16 %v913, %v912
      %v1111 = vpack.c.b16 %v915, %v914
      %v1112 = vpack.c.b16 %v917, %v916
      %v1113 = vpack.c.b16 %v919, %v918
      %v1114 = vpack.c.b16 %v921, %v920
      %v1115 = vpack.c.b16 %v923, %v922
      %v1116 = vpack.c.b16 %v925, %v924
      %v1117 = vpack.c.b16 %v927, %v926
      %v1118 = vpack.c.b16 %v929, %v928
      %v1119 = vpack.c.b16 %v931, %v930
      %v1120 = vpack.c.b16 %v933, %v932
      %v1121 = vpack.c.b16 %v935, %v934
      %v1122 = vpack.c.b16 %v937, %v936
      %v1123 = vpack.c.b16 %v939, %v938
      %v1124 = vpack.c.b16 %v941, %v940
      %v1125 = vpack.c.b16 %v943, %v942
      %v1126 = vpack.c.b16 %v945, %v944
      %v1127 = vpack.c.b16 %v947, %v946
      %v1128 = vpack.c.b16 %v949, %v948
      %v1129 = vpack.c.b16 %v951, %v950
      %v1130 = vpack.c.b16 %v953, %v952
      %v1131 = vpack.c.b16 %v955, %v954
      %v1132 = vpack.c.b16 %v957, %v956
      %v1133 = vpack.c.b16 %v959, %v958
      %v1134 = vpack.c.b16 %v961, %v960
      %v1135 = vpack.c.b16 %v963, %v962
      %v1136 = vpack.c.b16 %v965, %v964
      %v1137 = vpack.c.b16 %v967, %v966
      %v1138 = vpack.c.b16 %v969, %v968
      %v1139 = vpack.c.b16 %v971, %v970
      %v1140 = vpack.c.b16 %v973, %v972
      %v1141 = vpack.c.b16 %v975, %v974
      %v1142 = vpack.c.b16 %v977, %v976
      %v1143 = vpack.c.b16 %v979, %v978
      %v1144 = vpack.c.b16 %v981, %v980
      %v1145 = vpack.c.b16 %v983, %v982
      %v1146 = vpack.c.b16 %v985, %v984
      %v1147 = vpack.c.b16 %v987, %v986
      %v1148 = vpack.c.b16 %v989, %v988
      %v1149 = vpack.c.b16 %v991, %v990
      %v1150 = vpack.c.b16 %v993, %v992
      %v1151 = vpack.c.b16 %v995, %v994
      %v1152 = vpack.c.b16 %v997, %v996
      %v1153 = vpack.c.b16 %v999, %v998
      %v1154 = vpack.c.b16 %v1001, %v1000
      %v1155 = vpack.c.b16 %v1003, %v1002
      %v1156 = vpack.c.b16 %v1005, %v1004
      %v1157 = vpack.c.b16 %v1007, %v1006
      %v1158 = vpack.c.b16 %v1009, %v1008
      %v1159 = vpack.c.b16 %v1011, %v1010
      %v1160 = vpack.c.b16 %v1013, %v1012
      %v1161 = vpack.c.b16 %v1015, %v1014
      %v1162 = vpack.c.b16 %v1017, %v1016
      %v1163 = vpack.c.b16 %v1019, %v1018
      %v1164 = vpack.c.b16 %v1021, %v1020
      %v1165 = vpack.c.b16 %v1023, %v1022
      %v1166 = vpack.c.b16 %v1025, %v1024
      %v1167 = vpack.c.b16 %v1027, %v1026
      %v1168 = vpack.c.b16 %v1029, %v1028
      %v1169 = vpack.c.b16 %v1031, %v1030
      %v1170 = vpack.c.b16 %v1033, %v1032
      %v1171 = vpack.c.b16 %v1035, %v1034
      %v1172 = vpack.c.b16 %v1037, %v1036
      %v1173 = vpack.c.b16 %v1039, %v1038
      %v1174 = vpack.c.b16 %v1041, %v1040
      %v1175 = vpack.c.b16 %v1043, %v1042
      %v1176 = vpack.c.b16 %v1045, %v1044
      %v1177 = vpack.c.b16 %v1047, %v1046
      %v1178 = vpack.c.b16 %v1049, %v1048
      %v1179 = vpack.c.b16 %v1051, %v1050
      %1308 = vmatpush.bf16.msra.mxu0 %v1059
      %1309 = vmatpush.bf16.msra.mxu0 %v1058
      %1310 = vmatpush.bf16.msra.mxu0 %v1057
      %1311 = vmatpush.bf16.msra.mxu0 %v1056
      %1312 = vmatpush.bf16.msra.mxu0 %v1055
      %1313 = vmatpush.bf16.msra.mxu0 %v1054
      %1314 = vmatpush.bf16.msra.mxu0 %v1053
      %1315 = vmatpush.bf16.msra.mxu0 %v1052
      %1316 = vmatmul.bf16.gmra.mxu0 %v506
      %v1317 = vpop.f32.mrf.mxu0
      %v1318 = vadd.f32 %v502, %v1317
      %v1319 = vpop.f32.mrf.mxu0
      %1320 = vdwg.mxu0
      %1321 = vmatpush.bf16.msra.mxu0 %v1067
      %1322 = vmatpush.bf16.msra.mxu0 %v1066
      %1323 = vmatpush.bf16.msra.mxu0 %v1065
      %1324 = vmatpush.bf16.msra.mxu0 %v1064
      %1325 = vmatpush.bf16.msra.mxu0 %v1063
      %1326 = vmatpush.bf16.msra.mxu0 %v1062
      %1327 = vmatpush.bf16.msra.mxu0 %v1061
      %1328 = vmatpush.bf16.msra.mxu0 %v1060
      %1329 = vmatmul.bf16.gmra.mxu0 %v507
      %v1330 = vpop.f32.mrf.mxu0
      %v1331 = vadd.f32 %v1318, %v1330
      %v1332 = vpop.f32.mrf.mxu0
      %1333 = vdwg.mxu0
      %1334 = vmatpush.bf16.msra.mxu0 %v1075
      %1335 = vmatpush.bf16.msra.mxu0 %v1074
      %1336 = vmatpush.bf16.msra.mxu0 %v1073
      %1337 = vmatpush.bf16.msra.mxu0 %v1072
      %1338 = vmatpush.bf16.msra.mxu0 %v1071
      %1339 = vmatpush.bf16.msra.mxu0 %v1070
      %1340 = vmatpush.bf16.msra.mxu0 %v1069
      %1341 = vmatpush.bf16.msra.mxu0 %v1068
      %1342 = vmatmul.bf16.gmra.mxu0 %v508
      %v1343 = vpop.f32.mrf.mxu0
      %v1344 = vadd.f32 %v1331, %v1343
      %v1345 = vpop.f32.mrf.mxu0
      %1346 = vdwg.mxu0
      %1347 = vmatpush.bf16.msra.mxu0 %v1083
      %1348 = vmatpush.bf16.msra.mxu0 %v1082
      %1349 = vmatpush.bf16.msra.mxu0 %v1081
      %1350 = vmatpush.bf16.msra.mxu0 %v1080
      %1351 = vmatpush.bf16.msra.mxu0 %v1079
      %1352 = vmatpush.bf16.msra.mxu0 %v1078
      %1353 = vmatpush.bf16.msra.mxu0 %v1077
      %1354 = vmatpush.bf16.msra.mxu0 %v1076
      %1355 = vmatmul.bf16.gmra.mxu0 %v509
      %v1356 = vpop.f32.mrf.mxu0
      %v1357 = vadd.f32 %v1344, %v1356
      %v1358 = vpop.f32.mrf.mxu0
      %1359 = vdwg.mxu0
      %1360 = vmatpush.bf16.msra.mxu0 %v1091
      %1361 = vmatpush.bf16.msra.mxu0 %v1090
      %1362 = vmatpush.bf16.msra.mxu0 %v1089
      %1363 = vmatpush.bf16.msra.mxu0 %v1088
      %1364 = vmatpush.bf16.msra.mxu0 %v1087
      %1365 = vmatpush.bf16.msra.mxu0 %v1086
      %1366 = vmatpush.bf16.msra.mxu0 %v1085
      %1367 = vmatpush.bf16.msra.mxu0 %v1084
      %1368 = vmatmul.bf16.gmra.mxu0 %v510
      %v1369 = vpop.f32.mrf.mxu0
      %v1370 = vadd.f32 %v1357, %v1369
      %v1371 = vpop.f32.mrf.mxu0
      %1372 = vdwg.mxu0
      %1373 = vmatpush.bf16.msra.mxu0 %v1099
      %1374 = vmatpush.bf16.msra.mxu0 %v1098
      %1375 = vmatpush.bf16.msra.mxu0 %v1097
      %1376 = vmatpush.bf16.msra.mxu0 %v1096
      %1377 = vmatpush.bf16.msra.mxu0 %v1095
      %1378 = vmatpush.bf16.msra.mxu0 %v1094
      %1379 = vmatpush.bf16.msra.mxu0 %v1093
      %1380 = vmatpush.bf16.msra.mxu0 %v1092
      %1381 = vmatmul.bf16.gmra.mxu0 %v511
      %v1382 = vpop.f32.mrf.mxu0
      %v1383 = vadd.f32 %v1370, %v1382
      %v1384 = vpop.f32.mrf.mxu0
      %1385 = vdwg.mxu0
      %1386 = vmatpush.bf16.msra.mxu0 %v1107
      %1387 = vmatpush.bf16.msra.mxu0 %v1106
      %1388 = vmatpush.bf16.msra.mxu0 %v1105
      %1389 = vmatpush.bf16.msra.mxu0 %v1104
      %1390 = vmatpush.bf16.msra.mxu0 %v1103
      %1391 = vmatpush.bf16.msra.mxu0 %v1102
      %1392 = vmatpush.bf16.msra.mxu0 %v1101
      %1393 = vmatpush.bf16.msra.mxu0 %v1100
      %1394 = vmatmul.bf16.gmra.mxu0 %v512
      %v1395 = vpop.f32.mrf.mxu0
      %v1396 = vadd.f32 %v1383, %v1395
      %v1397 = vpop.f32.mrf.mxu0
      %1398 = vdwg.mxu0
      %1399 = vmatpush.bf16.msra.mxu0 %v1115
      %1400 = vmatpush.bf16.msra.mxu0 %v1114
      %1401 = vmatpush.bf16.msra.mxu0 %v1113
      %1402 = vmatpush.bf16.msra.mxu0 %v1112
      %1403 = vmatpush.bf16.msra.mxu0 %v1111
      %1404 = vmatpush.bf16.msra.mxu0 %v1110
      %1405 = vmatpush.bf16.msra.mxu0 %v1109
      %1406 = vmatpush.bf16.msra.mxu0 %v1108
      %1407 = vmatmul.bf16.gmra.mxu0 %v513
      %v1408 = vpop.f32.mrf.mxu0
      %v1409 = vadd.f32 %v1396, %v1408
      %v1410 = vpop.f32.mrf.mxu0
      %1411 = vdwg.mxu0
      %1412 = vmatpush.bf16.msra.mxu0 %v1123
      %1413 = vmatpush.bf16.msra.mxu0 %v1122
      %1414 = vmatpush.bf16.msra.mxu0 %v1121
      %1415 = vmatpush.bf16.msra.mxu0 %v1120
      %1416 = vmatpush.bf16.msra.mxu0 %v1119
      %1417 = vmatpush.bf16.msra.mxu0 %v1118
      %1418 = vmatpush.bf16.msra.mxu0 %v1117
      %1419 = vmatpush.bf16.msra.mxu0 %v1116
      %1420 = vmatmul.bf16.gmra.mxu0 %v516
      %v1421 = vpop.f32.mrf.mxu0
      %v1422 = vadd.f32 %v1409, %v1421
      %v1423 = vpop.f32.mrf.mxu0
      %1424 = vdwg.mxu0
      %1425 = vmatpush.bf16.msra.mxu0 %v1131
      %1426 = vmatpush.bf16.msra.mxu0 %v1130
      %1427 = vmatpush.bf16.msra.mxu0 %v1129
      %1428 = vmatpush.bf16.msra.mxu0 %v1128
      %1429 = vmatpush.bf16.msra.mxu0 %v1127
      %1430 = vmatpush.bf16.msra.mxu0 %v1126
      %1431 = vmatpush.bf16.msra.mxu0 %v1125
      %1432 = vmatpush.bf16.msra.mxu0 %v1124
      %1433 = vmatmul.bf16.gmra.mxu0 %v517
      %v1434 = vpop.f32.mrf.mxu0
      %v1435 = vadd.f32 %v1422, %v1434
      %v1436 = vpop.f32.mrf.mxu0
      %1437 = vdwg.mxu0
      %1438 = vmatpush.bf16.msra.mxu0 %v1139
      %1439 = vmatpush.bf16.msra.mxu0 %v1138
      %1440 = vmatpush.bf16.msra.mxu0 %v1137
      %1441 = vmatpush.bf16.msra.mxu0 %v1136
      %1442 = vmatpush.bf16.msra.mxu0 %v1135
      %1443 = vmatpush.bf16.msra.mxu0 %v1134
      %1444 = vmatpush.bf16.msra.mxu0 %v1133
      %1445 = vmatpush.bf16.msra.mxu0 %v1132
      %1446 = vmatmul.bf16.gmra.mxu0 %v518
      %v1447 = vpop.f32.mrf.mxu0
      %v1448 = vadd.f32 %v1435, %v1447
      %v1449 = vpop.f32.mrf.mxu0
      %1450 = vdwg.mxu0
      %1451 = vmatpush.bf16.msra.mxu0 %v1147
      %1452 = vmatpush.bf16.msra.mxu0 %v1146
      %1453 = vmatpush.bf16.msra.mxu0 %v1145
      %1454 = vmatpush.bf16.msra.mxu0 %v1144
      %1455 = vmatpush.bf16.msra.mxu0 %v1143
      %1456 = vmatpush.bf16.msra.mxu0 %v1142
      %1457 = vmatpush.bf16.msra.mxu0 %v1141
      %1458 = vmatpush.bf16.msra.mxu0 %v1140
      %1459 = vmatmul.bf16.gmra.mxu0 %v519
      %v1460 = vpop.f32.mrf.mxu0
      %v1461 = vadd.f32 %v1448, %v1460
      %v1462 = vpop.f32.mrf.mxu0
      %1463 = vdwg.mxu0
      %1464 = vmatpush.bf16.msra.mxu0 %v1155
      %1465 = vmatpush.bf16.msra.mxu0 %v1154
      %1466 = vmatpush.bf16.msra.mxu0 %v1153
      %1467 = vmatpush.bf16.msra.mxu0 %v1152
      %1468 = vmatpush.bf16.msra.mxu0 %v1151
      %1469 = vmatpush.bf16.msra.mxu0 %v1150
      %1470 = vmatpush.bf16.msra.mxu0 %v1149
      %1471 = vmatpush.bf16.msra.mxu0 %v1148
      %1472 = vmatmul.bf16.gmra.mxu0 %v520
      %v1473 = vpop.f32.mrf.mxu0
      %v1474 = vadd.f32 %v1461, %v1473
      %v1475 = vpop.f32.mrf.mxu0
      %1476 = vdwg.mxu0
      %1477 = vmatpush.bf16.msra.mxu0 %v1163
      %1478 = vmatpush.bf16.msra.mxu0 %v1162
      %1479 = vmatpush.bf16.msra.mxu0 %v1161
      %1480 = vmatpush.bf16.msra.mxu0 %v1160
      %1481 = vmatpush.bf16.msra.mxu0 %v1159
      %1482 = vmatpush.bf16.msra.mxu0 %v1158
      %1483 = vmatpush.bf16.msra.mxu0 %v1157
      %1484 = vmatpush.bf16.msra.mxu0 %v1156
      %1485 = vmatmul.bf16.gmra.mxu0 %v521
      %v1486 = vpop.f32.mrf.mxu0
      %v1487 = vadd.f32 %v1474, %v1486
      %v1488 = vpop.f32.mrf.mxu0
      %1489 = vdwg.mxu0
      %1490 = vmatpush.bf16.msra.mxu0 %v1171
      %1491 = vmatpush.bf16.msra.mxu0 %v1170
      %1492 = vmatpush.bf16.msra.mxu0 %v1169
      %1493 = vmatpush.bf16.msra.mxu0 %v1168
      %1494 = vmatpush.bf16.msra.mxu0 %v1167
      %1495 = vmatpush.bf16.msra.mxu0 %v1166
      %1496 = vmatpush.bf16.msra.mxu0 %v1165
      %1497 = vmatpush.bf16.msra.mxu0 %v1164
      %1498 = vmatmul.bf16.gmra.mxu0 %v522
      %v1499 = vpop.f32.mrf.mxu0
      %v1500 = vadd.f32 %v1487, %v1499
      %v1501 = vpop.f32.mrf.mxu0
      %1502 = vdwg.mxu0
      %1503 = vmatpush.bf16.msra.mxu0 %v1179
      %1504 = vmatpush.bf16.msra.mxu0 %v1178
      %1505 = vmatpush.bf16.msra.mxu0 %v1177
      %1506 = vmatpush.bf16.msra.mxu0 %v1176
      %1507 = vmatpush.bf16.msra.mxu0 %v1175
      %1508 = vmatpush.bf16.msra.mxu0 %v1174
      %1509 = vmatpush.bf16.msra.mxu0 %v1173
      %1510 = vmatpush.bf16.msra.mxu0 %v1172
      %1511 = vmatmul.bf16.gmra.mxu0 %v523
      %v1512 = vpop.f32.mrf.mxu0
      %v1513 = vadd.f32 %v1500, %v1512
      %v1514 = vpop.f32.mrf.mxu0
      %1515 = vdwg.mxu0
      %1516 = vst [vmem:[%s241] sm:$0x3] %v1513
      %p1517 = scmp.lt.s32.totalorder %s18, 5
      %s1518 = scalar_select %p1517, %s18, 5
      %p1519 = scmp.lt.s32.totalorder %s19, 0
      %s1520 = scalar_select %p1519, %s19, 0
      %s1521 = sadd.s32 %s1520, %s1518
      %s1522 = smul.addr %s1521, 2
      %s1523 = scalar_lea.vmem %s3, %s1522
      // Predicated region
      $region33: #{pcb_forward.1} parent=31 // pred_check
        %p1524 = pneg %p128
      $region34: #{pcb_forward.1} parent=31 // pred_check_branch
        %1526 = sbr.rel (%p1524) target = $region36
      $region35: #{pcb_forward.1} parent=31 // pred_region
        _
      $region36: #{pcb_forward.1} parent=31 // pred_fallthru
        _
    $region32: #{pcb_forward.1} parent=5 // pred_fallthru
      _
    %p1527 = scmp.le.s32.totalorder 2, %s9
    // Predicated region
    $region37: #{pcb_forward.1} parent=5 // pred_check
      %p1528 = pneg %p1527
    $region38: #{pcb_forward.1} parent=5 // pred_check_branch
      %1530 = sbr.rel (%p1528) target = $region40
    $region39: #{pcb_forward.1} parent=5 // pred_region
      %s1531 = ssub.s32 %s9, 2
      // Predicated region
      $region41: #{pcb_forward.1} parent=39 // pred_check
        %p1532 = pneg %p134
      $region42: #{pcb_forward.1} parent=39 // pred_check_branch
        %1534 = sbr.rel (%p1532) target = $region44
      $region43: #{pcb_forward.1} parent=39 // pred_region
        %p1535 = scmp.lt.s32.totalorder %s20, 5
        %s1536 = scalar_select %p1535, %s20, 5
        %p1537 = scmp.lt.s32.totalorder %s21, 0
        %s1538 = scalar_select %p1537, %s21, 0
        %s1539 = sadd.s32 %s1538, %s1536
        %s1540 = smul.addr %s1539, 2
        %s1541 = scalar_lea.vmem %s3, %s1540
      $region44: #{pcb_forward.1} parent=39 // pred_fallthru
        _
    $region40: #{pcb_forward.1} parent=5 // pred_fallthru
      _
  $region6: #{pcb_forward.1} parent=0 // loop_footer
    %s13 = sadd.s32 1, %s9
  $region7: #{pcb_forward.1} parent=0 // loop_footer_branch
    %8 = sbr.rel target = $region3
  $region8: #{pcb_forward.1} parent=0 // loop_exit
    _

</llo_original>
